<compile_context>
chip_gen: v5e
topology: v5e:2x2
jax: 0.10.0
libtpu: 0.0.40
codegen_flags: <defaults>
</compile_context>

<pallas_src>
import functools

import jax
import jax.numpy as jnp
from jax.experimental import pallas as pl
from jax.experimental.pallas import tpu as pltpu

_NEG_BIG = -1e30


def _round_up(x: int, mult: int) -> int:
    return (x + mult - 1) // mult * mult


def _cdiv(a: int, b: int) -> int:
    return (a + b - 1) // b


def _tpu_vmem_capacity() -> int:
    """Physical VMEM per core, with a conservative fallback."""
    try:
        return int(pltpu.get_tpu_info().vmem_capacity_bytes)
    except Exception:  # best-effort hardware query; assume the smallest part
        return 64 * 1024 * 1024


def _circle_loss_kernel(feat_ref, w_ref, padmask_ref, label_ref,
                        ypred_ref, loss_ref, sp_ref,
                        m_scr, l_scr, sp_scr,
                        *, margin: float, gamma: float, class_tile: int):
    O_p = 1.0 + margin
    Delta_p = 1.0 - margin

    c_idx = pl.program_id(1)
    n_c = pl.num_programs(1)

    @pl.when(c_idx == 0)
    def _init():
        m_scr[...] = jnp.full_like(m_scr, _NEG_BIG)
        l_scr[...] = jnp.zeros_like(l_scr)
        sp_scr[...] = jnp.zeros_like(sp_scr)

    # Operands are already L2-normalized (and bf16-cast) in the wrapper, so
    # the clipped cosine scores come straight from the MXU (f32 accumulate).
    y = jnp.dot(feat_ref[...], w_ref[...], preferred_element_type=jnp.float32)
    y = jnp.clip(y, -1.0, 1.0)                                   # (TM, Ct)
    ypred_ref[...] = y.astype(ypred_ref.dtype)

    tm, tc = y.shape
    col = jax.lax.broadcasted_iota(jnp.int32, (tm, tc), 1)
    # Compare against the tile-local label instead of offsetting the iota:
    # the subtraction runs on a (TM, 1) vector, not the full tile.
    onehot = col == (label_ref[...] - c_idx * class_tile)

    # sp contribution of this class tile (non-zero only in the tile that
    # holds the label column).
    sp_tile = jnp.sum(jnp.where(onehot, y, 0.0), axis=-1, keepdims=True)
    sp_scr[...] = sp_scr[...] + sp_tile

    # Circle-loss logits.  The positive branch only applies at the label
    # column, so it collapses to a (TM, 1) value derived from sp; the dense
    # path carries just the negative branch, one select and one additive mask.
    neg = (gamma * jnp.maximum(y + margin, 0.0)) * (y - margin)
    pos = (gamma * jnp.maximum(O_p - sp_tile, 0.0)) * (sp_tile - Delta_p)
    logits = jnp.where(onehot, pos, neg) + padmask_ref[...]

    # Online log-sum-exp across class tiles.
    m_prev = m_scr[...]
    m_new = jnp.maximum(m_prev, jnp.max(logits, axis=-1, keepdims=True))
    l_scr[...] = (l_scr[...] * jnp.exp(m_prev - m_new)
                  + jnp.sum(jnp.exp(logits - m_new), axis=-1, keepdims=True))
    m_scr[...] = m_new

    @pl.when(c_idx == n_c - 1)
    def _finalize():
        sp = sp_scr[...]
        tgt = (gamma * jnp.maximum(O_p - sp, 0.0)) * (sp - Delta_p)
        loss_ref[...] = m_scr[...] + jnp.log(l_scr[...]) - tgt   # lse - target
        sp_ref[...] = sp


def circle_loss_forward(feat, weight, label, *, num_classes,
                        m=0.35, gamma=30.0,
                        use_bf16_matmul=True, y_pred_dtype=jnp.float32):
    """Forward of LabelCircleLossModel._forward_train: returns (loss, sp, sn).

    Set `use_bf16_matmul=False` for an f32 matmul path (tighter accuracy),
    or `y_pred_dtype=jnp.bfloat16` to halve the y_pred writeback (v5e).
    """
    bs, feat_dim = feat.shape
    assert weight.shape == (feat_dim, num_classes)

    feat = feat.astype(jnp.float32)
    weight = weight.astype(jnp.float32)
    label = label.astype(jnp.int32)

    vmem_cap = _tpu_vmem_capacity()

    # ---- tiling -------------------------------------------------------------
    # Class tile: lane-dense (multiple of 128), capped so the per-tile VMEM
    # footprint stays small even on v7x; a grid axis with an online
    # log-sum-exp covers arbitrarily large class counts.
    class_tile = min(_round_up(max(num_classes, 128), 128), 2048)
    c_pad = _round_up(num_classes, class_tile)
    n_c = c_pad // class_tile

    # Batch tile: multiple of 8 sublanes; prefer >= 2 grid steps so the
    # "parallel" batch axis can shard across TensorCores (v7x megacore), and a
    # bigger tile on 128-MiB-VMEM parts for large batches.
    if bs >= 256 and vmem_cap >= 100 * 1024 * 1024:
        tm = 256
    elif bs >= 128:
        tm = 128
    elif bs > 8:
        tm = _round_up(_cdiv(bs, 2), 8)
    else:
        tm = _round_up(max(bs, 1), 8)
    bs_pad = _round_up(bs, tm)
    n_i = bs_pad // tm

    d_pad = _round_up(feat_dim, 128)

    # ---- operand preparation (all hoisted out of the kernel) ----------------
    # torch.nn.functional.normalize semantics (x / max(||x||, 1e-12)) in f32,
    # folded into the operands, then a single cast to the MXU dtype.
    op_dtype = jnp.bfloat16 if use_bf16_matmul else jnp.float32
    inv_f = 1.0 / jnp.maximum(
        jnp.sqrt(jnp.sum(feat * feat, axis=1, keepdims=True)), 1e-12)
    inv_w = 1.0 / jnp.maximum(
        jnp.sqrt(jnp.sum(weight * weight, axis=0, keepdims=True)), 1e-12)
    feat_n = (feat * inv_f).astype(op_dtype)
    w_n = (weight * inv_w).astype(op_dtype)

    feat_p = jnp.pad(feat_n, ((0, bs_pad - bs), (0, d_pad - feat_dim)))
    w_p = jnp.pad(w_n, ((0, d_pad - feat_dim), (0, c_pad - num_classes)))
    label_p = jnp.pad(label, (0, bs_pad - bs)).reshape(bs_pad, 1)
    # Additive pad mask: 0 for real classes, -1e30 for lane padding.
    pad_mask = jnp.where(jnp.arange(c_pad) < num_classes, 0.0,
                         _NEG_BIG).astype(jnp.float32).reshape(1, c_pad)

    kernel = functools.partial(_circle_loss_kernel, margin=float(m),
                               gamma=float(gamma), class_tile=class_tile)

    # Generation-aware VMEM limit (leave headroom for Mosaic scratch on v7x).
    vmem_limit = max(min(vmem_cap - 24 * 1024 * 1024, 64 * 1024 * 1024),
                     32 * 1024 * 1024)

    def _run(single_buffer_weight: bool):
        w_kwargs = {}
        if single_buffer_weight:
            # With a single class tile the weight block index never changes:
            # double-buffering it only wastes VMEM.
            w_kwargs = dict(pipeline_mode=pl.Buffered(1))
        outs = pl.pallas_call(
            kernel,
            out_shape=(
                jax.ShapeDtypeStruct((bs_pad, c_pad), y_pred_dtype),
                jax.ShapeDtypeStruct((bs_pad, 1), jnp.float32),
                jax.ShapeDtypeStruct((bs_pad, 1), jnp.float32),
            ),
            grid=(n_i, n_c),
            in_specs=[
                pl.BlockSpec((tm, d_pad), lambda i, c: (i, 0)),        # feat
                pl.BlockSpec((d_pad, class_tile), lambda i, c: (0, c),
                             **w_kwargs),                              # weight
                pl.BlockSpec((1, class_tile), lambda i, c: (0, c)),    # pad mask
                pl.BlockSpec((tm, 1), lambda i, c: (i, 0)),            # labels
            ],
            out_specs=(
                pl.BlockSpec((tm, class_tile), lambda i, c: (i, c)),   # y_pred
                pl.BlockSpec((tm, 1), lambda i, c: (i, 0)),            # loss
                pl.BlockSpec((tm, 1), lambda i, c: (i, 0)),            # sp
            ),
            scratch_shapes=[
                pltpu.VMEM((tm, 1), jnp.float32),   # running max
                pltpu.VMEM((tm, 1), jnp.float32),   # running sum-exp
                pltpu.VMEM((tm, 1), jnp.float32),   # accumulated sp
            ],
            compiler_params=pltpu.CompilerParams(
                dimension_semantics=("parallel", "arbitrary"),
                vmem_limit_bytes=int(vmem_limit),
            ),
        )(feat_p, w_p, pad_mask, label_p)
        return jax.block_until_ready(outs)

    # Try the single-buffered resident weight first (only meaningful when the
    # weight is actually resident); fall back to default buffering if the
    # installed Pallas rejects pipeline_mode / Buffered(1).
    attempts = [True, False] if n_c == 1 else [False]
    y_pred_p = loss_p = sp_p = None
    last_err = None
    for single_buf in attempts:
        try:
            y_pred_p, loss_p, sp_p = _run(single_buf)
            last_err = None
            break
        except Exception as err:  # pragma: no cover - graceful degradation
            last_err = err
    if last_err is not None:
        raise last_err

    y_pred = y_pred_p[:bs, :num_classes].astype(jnp.float32)
    loss = jnp.mean(loss_p[:bs, 0])
    sp = sp_p[:bs, 0]

    # sn = every non-label score, row-major, built from two shifted views of
    # y_pred plus a select so XLA fuses it into one elementwise pass (no
    # gather re-reading the full matrix).
    # TODO(synk): emitting sn (per-row label-column compaction) directly from
    # the kernel is awkward once the class dim is tiled; left as fused XLA glue.
    if num_classes > 1:
        cols = jnp.arange(num_classes - 1)[None, :]
        sn = jnp.where(cols < label[:, None],
                       y_pred[:, :-1], y_pred[:, 1:]).reshape(-1)
    else:
        sn = jnp.zeros((0,), jnp.float32)

    return loss, sp, sn


def _reference(feat, weight, label, *, num_classes, m=0.35, gamma=30.0):
    """Pure-f32 JAX reference mirroring the PyTorch forward, for sanity check."""
    O_p, Dp, Dn = 1.0 + m, 1.0 - m, m
    nf = feat / jnp.maximum(jnp.linalg.norm(feat, axis=1, keepdims=True), 1e-12)
    nw = weight / jnp.maximum(jnp.linalg.norm(weight, axis=0, keepdims=True), 1e-12)
    y_pred = jnp.clip(nf @ nw, -1.0, 1.0)
    y_true = jax.nn.one_hot(label, num_classes, dtype=jnp.float32)
    ap = jnp.maximum(O_p - y_pred, 0.0)
    an = jnp.maximum(y_pred + m, 0.0)
    logits = (y_true * (ap * (y_pred - Dp))
              + (1 - y_true) * (an * (y_pred - Dn))) * gamma
    logp = jax.nn.log_softmax(logits, axis=-1)
    loss = -jnp.mean(jnp.sum(y_true * logp, axis=-1))
    return loss, y_pred


if __name__ == "__main__":
    num_classes = 16
    feature_dim = 192     # module default
    bs = 8
    m, gamma = 0.35, 30.0

    key = jax.random.PRNGKey(0)
    k_feat, k_w, k_lbl = jax.random.split(key, 3)

    feat = jax.random.normal(k_feat, (bs, feature_dim), dtype=jnp.float32)
    # weight ~ standard normal (init_weights() -> weight.data.normal_())
    weight = jax.random.normal(k_w, (feature_dim, num_classes), dtype=jnp.float32)
    label = jax.random.randint(k_lbl, (bs,), 0, num_classes, dtype=jnp.int32)

    loss, sp, sn = circle_loss_forward(feat, weight, label,
                                       num_classes=num_classes, m=m, gamma=gamma)
    jax.block_until_ready((loss, sp, sn))

    # Sanity check against a pure-f32 JAX reference.  The kernel feeds bf16
    # operands to the MXU and gamma=30 amplifies the ~1e-2 cosine error into
    # the logits, hence the looser loss tolerance.
    ref_loss, ref_pred = _reference(feat, weight, label,
                                    num_classes=num_classes, m=m, gamma=gamma)
    ref_sp = ref_pred[jnp.arange(bs), label]
    cols = jnp.arange(num_classes - 1)[None, :]
    ref_sn = jnp.where(cols < label[:, None],
                       ref_pred[:, :-1], ref_pred[:, 1:]).reshape(-1)

    assert sp.shape == (bs,)
    assert sn.shape == (bs * (num_classes - 1),)
    assert jnp.allclose(sp, ref_sp, atol=2e-2), (sp, ref_sp)
    assert jnp.allclose(sn, ref_sn, atol=2e-2)
    assert jnp.allclose(loss, ref_loss, atol=2e-1), (loss, ref_loss)

    print("KERNEL_OK")
</pallas_src>

<mosaic_0001>
module attributes {stable_mosaic.version = 11 : i64} {
  func.func @_circle_loss_kernel(%arg0: i32, %arg1: i32, %arg2: memref<8x256xbf16, #tpu.memory_space<vmem>>, %arg3: memref<256x128xbf16, #tpu.memory_space<vmem>>, %arg4: memref<1x128xf32, #tpu.memory_space<vmem>>, %arg5: memref<8x1xi32, #tpu.memory_space<vmem>>, %arg6: memref<8x128xf32, #tpu.memory_space<vmem>>, %arg7: memref<8x1xf32, #tpu.memory_space<vmem>>, %arg8: memref<8x1xf32, #tpu.memory_space<vmem>>, %arg9: memref<8x1xf32, #tpu.memory_space<vmem>>, %arg10: memref<8x1xf32, #tpu.memory_space<vmem>>, %arg11: memref<8x1xf32, #tpu.memory_space<vmem>>) attributes {dimension_semantics = [#tpu.dimension_semantics<parallel>, #tpu.dimension_semantics<arbitrary>], iteration_bounds = array<i64: 1, 1>, scalar_prefetch = 0 : i64, scratch_operands = 3 : i64, tpu.core_type = #tpu.core_type<tc>, window_params = [{transform_indices = @transform_0, window_bounds = array<i64: 8, 256>}, {pipeline_mode = #tpu.pipeline_mode<synchronous>, transform_indices = @transform_1, window_bounds = array<i64: 256, 128>}, {transform_indices = @transform_2, window_bounds = array<i64: 1, 128>}, {transform_indices = @transform_3, window_bounds = array<i64: 8, 1>}, {transform_indices = @transform_4, window_bounds = array<i64: 8, 128>}, {transform_indices = @transform_5, window_bounds = array<i64: 8, 1>}, {transform_indices = @transform_6, window_bounds = array<i64: 8, 1>}]} {
    %c0_i32 = arith.constant 0 : i32
    %0 = arith.cmpi eq, %arg1, %c0_i32 : i32
    %1 = arith.extui %0 : i1 to i32
    %c0_i32_0 = arith.constant 0 : i32
    %2 = arith.cmpi ne, %1, %c0_i32_0 : i32
    scf.if %2 {
      %cst_38 = arith.constant -1.000000e+30 : f32
      %68 = vector.broadcast %cst_38 : f32 to vector<8x1xf32>
      %c0_39 = arith.constant 0 : index
      %c0_40 = arith.constant 0 : index
      %69 = vector.load %arg9[%c0_39, %c0_40] : memref<8x1xf32, #tpu.memory_space<vmem>>, vector<8x1xf32>
      tpu.vector_store %arg9[%c0_39, %c0_40], %68 {strides = array<i32>} : memref<8x1xf32, #tpu.memory_space<vmem>>, vector<8x1xf32>,
      %cst_41 = arith.constant 0.000000e+00 : f32
      %70 = vector.broadcast %cst_41 : f32 to vector<8x1xf32>
      %c0_42 = arith.constant 0 : index
      %c0_43 = arith.constant 0 : index
      %71 = vector.load %arg10[%c0_42, %c0_43] : memref<8x1xf32, #tpu.memory_space<vmem>>, vector<8x1xf32>
      tpu.vector_store %arg10[%c0_42, %c0_43], %70 {strides = array<i32>} : memref<8x1xf32, #tpu.memory_space<vmem>>, vector<8x1xf32>,
      %cst_44 = arith.constant 0.000000e+00 : f32
      %72 = vector.broadcast %cst_44 : f32 to vector<8x1xf32>
      %c0_45 = arith.constant 0 : index
      %c0_46 = arith.constant 0 : index
      %73 = vector.load %arg11[%c0_45, %c0_46] : memref<8x1xf32, #tpu.memory_space<vmem>>, vector<8x1xf32>
      tpu.vector_store %arg11[%c0_45, %c0_46], %72 {strides = array<i32>} : memref<8x1xf32, #tpu.memory_space<vmem>>, vector<8x1xf32>,
    } else {
    }
    %c0 = arith.constant 0 : index
    %c0_1 = arith.constant 0 : index
    %3 = vector.load %arg2[%c0, %c0_1] : memref<8x256xbf16, #tpu.memory_space<vmem>>, vector<8x256xbf16>
    %c0_2 = arith.constant 0 : index
    %c0_3 = arith.constant 0 : index
    %4 = vector.load %arg3[%c0_2, %c0_3] : memref<256x128xbf16, #tpu.memory_space<vmem>>, vector<256x128xbf16>
    %cst = arith.constant dense<0.000000e+00> : vector<8x128xf32>
    %5 = tpu.matmul %3, %4, %cst {dimension_numbers = #tpu.dot_dimension_numbers<[1], [0], [0], [1], [0, 0, 1, 1], [], []>} : vector<8x256xbf16>, vector<256x128xbf16>, vector<8x128xf32> -> vector<8x128xf32>
    %cst_4 = arith.constant -1.000000e+00 : f32
    %cst_5 = arith.constant 1.000000e+00 : f32
    %6 = vector.broadcast %cst_4 : f32 to vector<8x128xf32>
    %7 = arith.maximumf %6, %5 : vector<8x128xf32>
    %8 = vector.broadcast %cst_5 : f32 to vector<8x128xf32>
    %9 = arith.minimumf %8, %7 : vector<8x128xf32>
    %c0_6 = arith.constant 0 : index
    %c0_7 = arith.constant 0 : index
    %10 = vector.load %arg6[%c0_6, %c0_7] : memref<8x128xf32, #tpu.memory_space<vmem>>, vector<8x128xf32>
    tpu.vector_store %arg6[%c0_6, %c0_7], %9 {strides = array<i32>} : memref<8x128xf32, #tpu.memory_space<vmem>>, vector<8x128xf32>,
    %11 = tpu.iota {dimensions = array<i32: 1>} : vector<8x128xi32>
    %c0_8 = arith.constant 0 : index
    %c0_9 = arith.constant 0 : index
    %12 = vector.load %arg5[%c0_8, %c0_9] : memref<8x1xi32, #tpu.memory_space<vmem>>, vector<8x1xi32>
    %c128_i32 = arith.constant 128 : i32
    %13 = arith.muli %arg1, %c128_i32 : i32
    %14 = vector.broadcast %13 : i32 to vector<8x1xi32>
    %15 = arith.subi %12, %14 : vector<8x1xi32>
    %16 = vector.broadcast %15 : vector<8x1xi32> to vector<8x128xi32>
    %17 = arith.cmpi eq, %11, %16 : vector<8x128xi32>
    %cst_10 = arith.constant 0.000000e+00 : f32
    %18 = vector.broadcast %cst_10 : f32 to vector<8x128xf32>
    %19 = arith.select %17, %9, %18 : vector<8x128xi1>, vector<8x128xf32>
    %cst_11 = arith.constant dense<0.000000e+00> : vector<8xf32>
    %20 = vector.multi_reduction <add>, %19, %cst_11 [1] : vector<8x128xf32> to vector<8xf32>
    %21 = vector.shape_cast %20 : vector<8xf32> to vector<8x1xf32>
    %c0_12 = arith.constant 0 : index
    %c0_13 = arith.constant 0 : index
    %22 = vector.load %arg11[%c0_12, %c0_13] : memref<8x1xf32, #tpu.memory_space<vmem>>, vector<8x1xf32>
    %23 = arith.addf %22, %21 : vector<8x1xf32>
    %c0_14 = arith.constant 0 : index
    %c0_15 = arith.constant 0 : index
    %24 = vector.load %arg11[%c0_14, %c0_15] : memref<8x1xf32, #tpu.memory_space<vmem>>, vector<8x1xf32>
    tpu.vector_store %arg11[%c0_14, %c0_15], %23 {strides = array<i32>} : memref<8x1xf32, #tpu.memory_space<vmem>>, vector<8x1xf32>,
    %cst_16 = arith.constant 3.500000e-01 : f32
    %25 = vector.broadcast %cst_16 : f32 to vector<8x128xf32>
    %26 = arith.addf %9, %25 : vector<8x128xf32>
    %cst_17 = arith.constant 0.000000e+00 : f32
    %27 = vector.broadcast %cst_17 : f32 to vector<8x128xf32>
    %28 = arith.maximumf %26, %27 : vector<8x128xf32>
    %cst_18 = arith.constant 3.000000e+01 : f32
    %29 = vector.broadcast %cst_18 : f32 to vector<8x128xf32>
    %30 = arith.mulf %29, %28 : vector<8x128xf32>
    %cst_19 = arith.constant 3.500000e-01 : f32
    %31 = vector.broadcast %cst_19 : f32 to vector<8x128xf32>
    %32 = arith.subf %9, %31 : vector<8x128xf32>
    %33 = arith.mulf %30, %32 : vector<8x128xf32>
    %cst_20 = arith.constant 1.350000e+00 : f32
    %34 = vector.broadcast %cst_20 : f32 to vector<8x1xf32>
    %35 = arith.subf %34, %21 : vector<8x1xf32>
    %cst_21 = arith.constant 0.000000e+00 : f32
    %36 = vector.broadcast %cst_21 : f32 to vector<8x1xf32>
    %37 = arith.maximumf %35, %36 : vector<8x1xf32>
    %cst_22 = arith.constant 3.000000e+01 : f32
    %38 = vector.broadcast %cst_22 : f32 to vector<8x1xf32>
    %39 = arith.mulf %38, %37 : vector<8x1xf32>
    %cst_23 = arith.constant 6.500000e-01 : f32
    %40 = vector.broadcast %cst_23 : f32 to vector<8x1xf32>
    %41 = arith.subf %21, %40 : vector<8x1xf32>
    %42 = arith.mulf %39, %41 : vector<8x1xf32>
    %43 = vector.shape_cast %42 : vector<8x1xf32> to vector<8x1xf32>
    %44 = vector.broadcast %43 : vector<8x1xf32> to vector<8x128xf32>
    %45 = arith.select %17, %44, %33 : vector<8x128xi1>, vector<8x128xf32>
    %c0_24 = arith.constant 0 : index
    %c0_25 = arith.constant 0 : index
    %46 = vector.load %arg4[%c0_24, %c0_25] : memref<1x128xf32, #tpu.memory_space<vmem>>, vector<1x128xf32>
    %47 = vector.broadcast %46 : vector<1x128xf32> to vector<8x128xf32>
    %48 = arith.addf %45, %47 : vector<8x128xf32>
    %c0_26 = arith.constant 0 : index
    %c0_27 = arith.constant 0 : index
    %49 = vector.load %arg9[%c0_26, %c0_27] : memref<8x1xf32, #tpu.memory_space<vmem>>, vector<8x1xf32>
    %cst_28 = arith.constant dense<0xFF800000> : vector<8xf32>
    %50 = vector.multi_reduction <maximumf>, %48, %cst_28 [1] : vector<8x128xf32> to vector<8xf32>
    %51 = vector.shape_cast %50 : vector<8xf32> to vector<8x1xf32>
    %52 = arith.maximumf %49, %51 : vector<8x1xf32>
    %c0_29 = arith.constant 0 : index
    %c0_30 = arith.constant 0 : index
    %53 = vector.load %arg10[%c0_29, %c0_30] : memref<8x1xf32, #tpu.memory_space<vmem>>, vector<8x1xf32>
    %54 = arith.subf %49, %52 : vector<8x1xf32>
    %55 = math.exp %54 : vector<8x1xf32>
    %56 = arith.mulf %53, %55 : vector<8x1xf32>
    %57 = vector.broadcast %52 : vector<8x1xf32> to vector<8x128xf32>
    %58 = arith.subf %48, %57 : vector<8x128xf32>
    %59 = math.exp %58 : vector<8x128xf32>
    %cst_31 = arith.constant dense<0.000000e+00> : vector<8xf32>
    %60 = vector.multi_reduction <add>, %59, %cst_31 [1] : vector<8x128xf32> to vector<8xf32>
    %61 = vector.shape_cast %60 : vector<8xf32> to vector<8x1xf32>
    %62 = arith.addf %56, %61 : vector<8x1xf32>
    %c0_32 = arith.constant 0 : index
    %c0_33 = arith.constant 0 : index
    %63 = vector.load %arg10[%c0_32, %c0_33] : memref<8x1xf32, #tpu.memory_space<vmem>>, vector<8x1xf32>
    tpu.vector_store %arg10[%c0_32, %c0_33], %62 {strides = array<i32>} : memref<8x1xf32, #tpu.memory_space<vmem>>, vector<8x1xf32>,
    %c0_34 = arith.constant 0 : index
    %c0_35 = arith.constant 0 : index
    %64 = vector.load %arg9[%c0_34, %c0_35] : memref<8x1xf32, #tpu.memory_space<vmem>>, vector<8x1xf32>
    tpu.vector_store %arg9[%c0_34, %c0_35], %52 {strides = array<i32>} : memref<8x1xf32, #tpu.memory_space<vmem>>, vector<8x1xf32>,
    %c0_i32_36 = arith.constant 0 : i32
    %65 = arith.cmpi eq, %arg1, %c0_i32_36 : i32
    %66 = arith.extui %65 : i1 to i32
    %c0_i32_37 = arith.constant 0 : i32
    %67 = arith.cmpi ne, %66, %c0_i32_37 : i32
    scf.if %67 {
      %c0_38 = arith.constant 0 : index
      %c0_39 = arith.constant 0 : index
      %68 = vector.load %arg11[%c0_38, %c0_39] : memref<8x1xf32, #tpu.memory_space<vmem>>, vector<8x1xf32>
      %cst_40 = arith.constant 1.350000e+00 : f32
      %69 = vector.broadcast %cst_40 : f32 to vector<8x1xf32>
      %70 = arith.subf %69, %68 : vector<8x1xf32>
      %cst_41 = arith.constant 0.000000e+00 : f32
      %71 = vector.broadcast %cst_41 : f32 to vector<8x1xf32>
      %72 = arith.maximumf %70, %71 : vector<8x1xf32>
      %cst_42 = arith.constant 3.000000e+01 : f32
      %73 = vector.broadcast %cst_42 : f32 to vector<8x1xf32>
      %74 = arith.mulf %73, %72 : vector<8x1xf32>
      %cst_43 = arith.constant 6.500000e-01 : f32
      %75 = vector.broadcast %cst_43 : f32 to vector<8x1xf32>
      %76 = arith.subf %68, %75 : vector<8x1xf32>
      %77 = arith.mulf %74, %76 : vector<8x1xf32>
      %c0_44 = arith.constant 0 : index
      %c0_45 = arith.constant 0 : index
      %78 = vector.load %arg9[%c0_44, %c0_45] : memref<8x1xf32, #tpu.memory_space<vmem>>, vector<8x1xf32>
      %c0_46 = arith.constant 0 : index
      %c0_47 = arith.constant 0 : index
      %79 = vector.load %arg10[%c0_46, %c0_47] : memref<8x1xf32, #tpu.memory_space<vmem>>, vector<8x1xf32>
      %80 = math.log %79 : vector<8x1xf32>
      %81 = arith.addf %78, %80 : vector<8x1xf32>
      %82 = arith.subf %81, %77 : vector<8x1xf32>
      %c0_48 = arith.constant 0 : index
      %c0_49 = arith.constant 0 : index
      %83 = vector.load %arg7[%c0_48, %c0_49] : memref<8x1xf32, #tpu.memory_space<vmem>>, vector<8x1xf32>
      tpu.vector_store %arg7[%c0_48, %c0_49], %82 {strides = array<i32>} : memref<8x1xf32, #tpu.memory_space<vmem>>, vector<8x1xf32>,
      %c0_50 = arith.constant 0 : index
      %c0_51 = arith.constant 0 : index
      %84 = vector.load %arg8[%c0_50, %c0_51] : memref<8x1xf32, #tpu.memory_space<vmem>>, vector<8x1xf32>
      tpu.vector_store %arg8[%c0_50, %c0_51], %68 {strides = array<i32>} : memref<8x1xf32, #tpu.memory_space<vmem>>, vector<8x1xf32>,
    } else {
    }
    return
  }
  func.func @transform_0(%arg0: i32, %arg1: i32) -> (i32, i32) {
    %c0_i32 = arith.constant 0 : i32
    %c0_i32_0 = arith.constant 0 : i32
    return %arg0, %c0_i32 : i32, i32
  }
  func.func @transform_1(%arg0: i32, %arg1: i32) -> (i32, i32) {
    %c0_i32 = arith.constant 0 : i32
    %c0_i32_0 = arith.constant 0 : i32
    return %c0_i32, %arg1 : i32, i32
  }
  func.func @transform_2(%arg0: i32, %arg1: i32) -> (i32, i32) {
    %c0_i32 = arith.constant 0 : i32
    %c0_i32_0 = arith.constant 0 : i32
    return %c0_i32, %arg1 : i32, i32
  }
  func.func @transform_3(%arg0: i32, %arg1: i32) -> (i32, i32) {
    %c0_i32 = arith.constant 0 : i32
    %c0_i32_0 = arith.constant 0 : i32
    return %arg0, %c0_i32 : i32, i32
  }
  func.func @transform_4(%arg0: i32, %arg1: i32) -> (i32, i32) {
    %c0_i32 = arith.constant 0 : i32
    return %arg0, %arg1 : i32, i32
  }
  func.func @transform_5(%arg0: i32, %arg1: i32) -> (i32, i32) {
    %c0_i32 = arith.constant 0 : i32
    %c0_i32_0 = arith.constant 0 : i32
    return %arg0, %c0_i32 : i32, i32
  }
  func.func @transform_6(%arg0: i32, %arg1: i32) -> (i32, i32) {
    %c0_i32 = arith.constant 0 : i32
    %c0_i32_0 = arith.constant 0 : i32
    return %arg0, %c0_i32 : i32, i32
  }
}

module attributes {stable_mosaic.version = 11 : i64} {
  func.func @_circle_loss_kernel(%arg0: i32, %arg1: i32, %arg2: memref<8x256xbf16, #tpu.memory_space<vmem>>, %arg3: memref<256x128xbf16, #tpu.memory_space<vmem>>, %arg4: memref<1x128xf32, #tpu.memory_space<vmem>>, %arg5: memref<8x1xi32, #tpu.memory_space<vmem>>, %arg6: memref<8x128xf32, #tpu.memory_space<vmem>>, %arg7: memref<8x1xf32, #tpu.memory_space<vmem>>, %arg8: memref<8x1xf32, #tpu.memory_space<vmem>>, %arg9: memref<8x1xf32, #tpu.memory_space<vmem>>, %arg10: memref<8x1xf32, #tpu.memory_space<vmem>>, %arg11: memref<8x1xf32, #tpu.memory_space<vmem>>) attributes {dimension_semantics = [#tpu.dimension_semantics<parallel>, #tpu.dimension_semantics<arbitrary>], iteration_bounds = array<i64: 1, 1>, scalar_prefetch = 0 : i64, scratch_operands = 3 : i64, tpu.core_type = #tpu.core_type<tc>, window_params = [{transform_indices = @transform_0, window_bounds = array<i64: 8, 256>}, {transform_indices = @transform_1, window_bounds = array<i64: 256, 128>}, {transform_indices = @transform_2, window_bounds = array<i64: 1, 128>}, {transform_indices = @transform_3, window_bounds = array<i64: 8, 1>}, {transform_indices = @transform_4, window_bounds = array<i64: 8, 128>}, {transform_indices = @transform_5, window_bounds = array<i64: 8, 1>}, {transform_indices = @transform_6, window_bounds = array<i64: 8, 1>}]} {
    %c0_i32 = arith.constant 0 : i32
    %0 = arith.cmpi eq, %arg1, %c0_i32 : i32
    %1 = arith.extui %0 : i1 to i32
    %c0_i32_0 = arith.constant 0 : i32
    %2 = arith.cmpi ne, %1, %c0_i32_0 : i32
    scf.if %2 {
      %cst_38 = arith.constant -1.000000e+30 : f32
      %68 = vector.broadcast %cst_38 : f32 to vector<8x1xf32>
      %c0_39 = arith.constant 0 : index
      %c0_40 = arith.constant 0 : index
      %69 = vector.load %arg9[%c0_39, %c0_40] : memref<8x1xf32, #tpu.memory_space<vmem>>, vector<8x1xf32>
      tpu.vector_store %arg9[%c0_39, %c0_40], %68 {strides = array<i32>} : memref<8x1xf32, #tpu.memory_space<vmem>>, vector<8x1xf32>,
      %cst_41 = arith.constant 0.000000e+00 : f32
      %70 = vector.broadcast %cst_41 : f32 to vector<8x1xf32>
      %c0_42 = arith.constant 0 : index
      %c0_43 = arith.constant 0 : index
      %71 = vector.load %arg10[%c0_42, %c0_43] : memref<8x1xf32, #tpu.memory_space<vmem>>, vector<8x1xf32>
      tpu.vector_store %arg10[%c0_42, %c0_43], %70 {strides = array<i32>} : memref<8x1xf32, #tpu.memory_space<vmem>>, vector<8x1xf32>,
      %cst_44 = arith.constant 0.000000e+00 : f32
      %72 = vector.broadcast %cst_44 : f32 to vector<8x1xf32>
      %c0_45 = arith.constant 0 : index
      %c0_46 = arith.constant 0 : index
      %73 = vector.load %arg11[%c0_45, %c0_46] : memref<8x1xf32, #tpu.memory_space<vmem>>, vector<8x1xf32>
      tpu.vector_store %arg11[%c0_45, %c0_46], %72 {strides = array<i32>} : memref<8x1xf32, #tpu.memory_space<vmem>>, vector<8x1xf32>,
    } else {
    }
    %c0 = arith.constant 0 : index
    %c0_1 = arith.constant 0 : index
    %3 = vector.load %arg2[%c0, %c0_1] : memref<8x256xbf16, #tpu.memory_space<vmem>>, vector<8x256xbf16>
    %c0_2 = arith.constant 0 : index
    %c0_3 = arith.constant 0 : index
    %4 = vector.load %arg3[%c0_2, %c0_3] : memref<256x128xbf16, #tpu.memory_space<vmem>>, vector<256x128xbf16>
    %cst = arith.constant dense<0.000000e+00> : vector<8x128xf32>
    %5 = tpu.matmul %3, %4, %cst {dimension_numbers = #tpu.dot_dimension_numbers<[1], [0], [0], [1], [0, 0, 1, 1], [], []>} : vector<8x256xbf16>, vector<256x128xbf16>, vector<8x128xf32> -> vector<8x128xf32>
    %cst_4 = arith.constant -1.000000e+00 : f32
    %cst_5 = arith.constant 1.000000e+00 : f32
    %6 = vector.broadcast %cst_4 : f32 to vector<8x128xf32>
    %7 = arith.maximumf %6, %5 : vector<8x128xf32>
    %8 = vector.broadcast %cst_5 : f32 to vector<8x128xf32>
    %9 = arith.minimumf %8, %7 : vector<8x128xf32>
    %c0_6 = arith.constant 0 : index
    %c0_7 = arith.constant 0 : index
    %10 = vector.load %arg6[%c0_6, %c0_7] : memref<8x128xf32, #tpu.memory_space<vmem>>, vector<8x128xf32>
    tpu.vector_store %arg6[%c0_6, %c0_7], %9 {strides = array<i32>} : memref<8x128xf32, #tpu.memory_space<vmem>>, vector<8x128xf32>,
    %11 = tpu.iota {dimensions = array<i32: 1>} : vector<8x128xi32>
    %c0_8 = arith.constant 0 : index
    %c0_9 = arith.constant 0 : index
    %12 = vector.load %arg5[%c0_8, %c0_9] : memref<8x1xi32, #tpu.memory_space<vmem>>, vector<8x1xi32>
    %c128_i32 = arith.constant 128 : i32
    %13 = arith.muli %arg1, %c128_i32 : i32
    %14 = vector.broadcast %13 : i32 to vector<8x1xi32>
    %15 = arith.subi %12, %14 : vector<8x1xi32>
    %16 = vector.broadcast %15 : vector<8x1xi32> to vector<8x128xi32>
    %17 = arith.cmpi eq, %11, %16 : vector<8x128xi32>
    %cst_10 = arith.constant 0.000000e+00 : f32
    %18 = vector.broadcast %cst_10 : f32 to vector<8x128xf32>
    %19 = arith.select %17, %9, %18 : vector<8x128xi1>, vector<8x128xf32>
    %cst_11 = arith.constant dense<0.000000e+00> : vector<8xf32>
    %20 = vector.multi_reduction <add>, %19, %cst_11 [1] : vector<8x128xf32> to vector<8xf32>
    %21 = vector.shape_cast %20 : vector<8xf32> to vector<8x1xf32>
    %c0_12 = arith.constant 0 : index
    %c0_13 = arith.constant 0 : index
    %22 = vector.load %arg11[%c0_12, %c0_13] : memref<8x1xf32, #tpu.memory_space<vmem>>, vector<8x1xf32>
    %23 = arith.addf %22, %21 : vector<8x1xf32>
    %c0_14 = arith.constant 0 : index
    %c0_15 = arith.constant 0 : index
    %24 = vector.load %arg11[%c0_14, %c0_15] : memref<8x1xf32, #tpu.memory_space<vmem>>, vector<8x1xf32>
    tpu.vector_store %arg11[%c0_14, %c0_15], %23 {strides = array<i32>} : memref<8x1xf32, #tpu.memory_space<vmem>>, vector<8x1xf32>,
    %cst_16 = arith.constant 3.500000e-01 : f32
    %25 = vector.broadcast %cst_16 : f32 to vector<8x128xf32>
    %26 = arith.addf %9, %25 : vector<8x128xf32>
    %cst_17 = arith.constant 0.000000e+00 : f32
    %27 = vector.broadcast %cst_17 : f32 to vector<8x128xf32>
    %28 = arith.maximumf %26, %27 : vector<8x128xf32>
    %cst_18 = arith.constant 3.000000e+01 : f32
    %29 = vector.broadcast %cst_18 : f32 to vector<8x128xf32>
    %30 = arith.mulf %29, %28 : vector<8x128xf32>
    %cst_19 = arith.constant 3.500000e-01 : f32
    %31 = vector.broadcast %cst_19 : f32 to vector<8x128xf32>
    %32 = arith.subf %9, %31 : vector<8x128xf32>
    %33 = arith.mulf %30, %32 : vector<8x128xf32>
    %cst_20 = arith.constant 1.350000e+00 : f32
    %34 = vector.broadcast %cst_20 : f32 to vector<8x1xf32>
    %35 = arith.subf %34, %21 : vector<8x1xf32>
    %cst_21 = arith.constant 0.000000e+00 : f32
    %36 = vector.broadcast %cst_21 : f32 to vector<8x1xf32>
    %37 = arith.maximumf %35, %36 : vector<8x1xf32>
    %cst_22 = arith.constant 3.000000e+01 : f32
    %38 = vector.broadcast %cst_22 : f32 to vector<8x1xf32>
    %39 = arith.mulf %38, %37 : vector<8x1xf32>
    %cst_23 = arith.constant 6.500000e-01 : f32
    %40 = vector.broadcast %cst_23 : f32 to vector<8x1xf32>
    %41 = arith.subf %21, %40 : vector<8x1xf32>
    %42 = arith.mulf %39, %41 : vector<8x1xf32>
    %43 = vector.shape_cast %42 : vector<8x1xf32> to vector<8x1xf32>
    %44 = vector.broadcast %43 : vector<8x1xf32> to vector<8x128xf32>
    %45 = arith.select %17, %44, %33 : vector<8x128xi1>, vector<8x128xf32>
    %c0_24 = arith.constant 0 : index
    %c0_25 = arith.constant 0 : index
    %46 = vector.load %arg4[%c0_24, %c0_25] : memref<1x128xf32, #tpu.memory_space<vmem>>, vector<1x128xf32>
    %47 = vector.broadcast %46 : vector<1x128xf32> to vector<8x128xf32>
    %48 = arith.addf %45, %47 : vector<8x128xf32>
    %c0_26 = arith.constant 0 : index
    %c0_27 = arith.constant 0 : index
    %49 = vector.load %arg9[%c0_26, %c0_27] : memref<8x1xf32, #tpu.memory_space<vmem>>, vector<8x1xf32>
    %cst_28 = arith.constant dense<0xFF800000> : vector<8xf32>
    %50 = vector.multi_reduction <maximumf>, %48, %cst_28 [1] : vector<8x128xf32> to vector<8xf32>
    %51 = vector.shape_cast %50 : vector<8xf32> to vector<8x1xf32>
    %52 = arith.maximumf %49, %51 : vector<8x1xf32>
    %c0_29 = arith.constant 0 : index
    %c0_30 = arith.constant 0 : index
    %53 = vector.load %arg10[%c0_29, %c0_30] : memref<8x1xf32, #tpu.memory_space<vmem>>, vector<8x1xf32>
    %54 = arith.subf %49, %52 : vector<8x1xf32>
    %55 = math.exp %54 : vector<8x1xf32>
    %56 = arith.mulf %53, %55 : vector<8x1xf32>
    %57 = vector.broadcast %52 : vector<8x1xf32> to vector<8x128xf32>
    %58 = arith.subf %48, %57 : vector<8x128xf32>
    %59 = math.exp %58 : vector<8x128xf32>
    %cst_31 = arith.constant dense<0.000000e+00> : vector<8xf32>
    %60 = vector.multi_reduction <add>, %59, %cst_31 [1] : vector<8x128xf32> to vector<8xf32>
    %61 = vector.shape_cast %60 : vector<8xf32> to vector<8x1xf32>
    %62 = arith.addf %56, %61 : vector<8x1xf32>
    %c0_32 = arith.constant 0 : index
    %c0_33 = arith.constant 0 : index
    %63 = vector.load %arg10[%c0_32, %c0_33] : memref<8x1xf32, #tpu.memory_space<vmem>>, vector<8x1xf32>
    tpu.vector_store %arg10[%c0_32, %c0_33], %62 {strides = array<i32>} : memref<8x1xf32, #tpu.memory_space<vmem>>, vector<8x1xf32>,
    %c0_34 = arith.constant 0 : index
    %c0_35 = arith.constant 0 : index
    %64 = vector.load %arg9[%c0_34, %c0_35] : memref<8x1xf32, #tpu.memory_space<vmem>>, vector<8x1xf32>
    tpu.vector_store %arg9[%c0_34, %c0_35], %52 {strides = array<i32>} : memref<8x1xf32, #tpu.memory_space<vmem>>, vector<8x1xf32>,
    %c0_i32_36 = arith.constant 0 : i32
    %65 = arith.cmpi eq, %arg1, %c0_i32_36 : i32
    %66 = arith.extui %65 : i1 to i32
    %c0_i32_37 = arith.constant 0 : i32
    %67 = arith.cmpi ne, %66, %c0_i32_37 : i32
    scf.if %67 {
      %c0_38 = arith.constant 0 : index
      %c0_39 = arith.constant 0 : index
      %68 = vector.load %arg11[%c0_38, %c0_39] : memref<8x1xf32, #tpu.memory_space<vmem>>, vector<8x1xf32>
      %cst_40 = arith.constant 1.350000e+00 : f32
      %69 = vector.broadcast %cst_40 : f32 to vector<8x1xf32>
      %70 = arith.subf %69, %68 : vector<8x1xf32>
      %cst_41 = arith.constant 0.000000e+00 : f32
      %71 = vector.broadcast %cst_41 : f32 to vector<8x1xf32>
      %72 = arith.maximumf %70, %71 : vector<8x1xf32>
      %cst_42 = arith.constant 3.000000e+01 : f32
      %73 = vector.broadcast %cst_42 : f32 to vector<8x1xf32>
      %74 = arith.mulf %73, %72 : vector<8x1xf32>
      %cst_43 = arith.constant 6.500000e-01 : f32
      %75 = vector.broadcast %cst_43 : f32 to vector<8x1xf32>
      %76 = arith.subf %68, %75 : vector<8x1xf32>
      %77 = arith.mulf %74, %76 : vector<8x1xf32>
      %c0_44 = arith.constant 0 : index
      %c0_45 = arith.constant 0 : index
      %78 = vector.load %arg9[%c0_44, %c0_45] : memref<8x1xf32, #tpu.memory_space<vmem>>, vector<8x1xf32>
      %c0_46 = arith.constant 0 : index
      %c0_47 = arith.constant 0 : index
      %79 = vector.load %arg10[%c0_46, %c0_47] : memref<8x1xf32, #tpu.memory_space<vmem>>, vector<8x1xf32>
      %80 = math.log %79 : vector<8x1xf32>
      %81 = arith.addf %78, %80 : vector<8x1xf32>
      %82 = arith.subf %81, %77 : vector<8x1xf32>
      %c0_48 = arith.constant 0 : index
      %c0_49 = arith.constant 0 : index
      %83 = vector.load %arg7[%c0_48, %c0_49] : memref<8x1xf32, #tpu.memory_space<vmem>>, vector<8x1xf32>
      tpu.vector_store %arg7[%c0_48, %c0_49], %82 {strides = array<i32>} : memref<8x1xf32, #tpu.memory_space<vmem>>, vector<8x1xf32>,
      %c0_50 = arith.constant 0 : index
      %c0_51 = arith.constant 0 : index
      %84 = vector.load %arg8[%c0_50, %c0_51] : memref<8x1xf32, #tpu.memory_space<vmem>>, vector<8x1xf32>
      tpu.vector_store %arg8[%c0_50, %c0_51], %68 {strides = array<i32>} : memref<8x1xf32, #tpu.memory_space<vmem>>, vector<8x1xf32>,
    } else {
    }
    return
  }
  func.func @transform_0(%arg0: i32, %arg1: i32) -> (i32, i32) {
    %c0_i32 = arith.constant 0 : i32
    %c0_i32_0 = arith.constant 0 : i32
    return %arg0, %c0_i32 : i32, i32
  }
  func.func @transform_1(%arg0: i32, %arg1: i32) -> (i32, i32) {
    %c0_i32 = arith.constant 0 : i32
    %c0_i32_0 = arith.constant 0 : i32
    return %c0_i32, %arg1 : i32, i32
  }
  func.func @transform_2(%arg0: i32, %arg1: i32) -> (i32, i32) {
    %c0_i32 = arith.constant 0 : i32
    %c0_i32_0 = arith.constant 0 : i32
    return %c0_i32, %arg1 : i32, i32
  }
  func.func @transform_3(%arg0: i32, %arg1: i32) -> (i32, i32) {
    %c0_i32 = arith.constant 0 : i32
    %c0_i32_0 = arith.constant 0 : i32
    return %arg0, %c0_i32 : i32, i32
  }
  func.func @transform_4(%arg0: i32, %arg1: i32) -> (i32, i32) {
    %c0_i32 = arith.constant 0 : i32
    return %arg0, %arg1 : i32, i32
  }
  func.func @transform_5(%arg0: i32, %arg1: i32) -> (i32, i32) {
    %c0_i32 = arith.constant 0 : i32
    %c0_i32_0 = arith.constant 0 : i32
    return %arg0, %c0_i32 : i32, i32
  }
  func.func @transform_6(%arg0: i32, %arg1: i32) -> (i32, i32) {
    %c0_i32 = arith.constant 0 : i32
    %c0_i32_0 = arith.constant 0 : i32
    return %arg0, %c0_i32 : i32, i32
  }
}

</mosaic_0001>

<llo_original>
// kernel: tpu_custom_call.1
$region0: #{tpu_custom_call.1}
  #allocation0 [shape = 'u32[]', space=smem, size = 0x4, offset = 0x4, fixed_abs, tag = 'smem constant byte address 0x4 - core index']
  #allocation1 [shape = 'u32[72,128]{1,0:T(1,128)}', space=vmem, size = 0x9000, scoped, tag = 'internal scratch']
  #allocation2 [shape = 'f32[8,1]{1,0:T(8,128)}', space=vmem, size = 0x1000, scoped, tag = 'scratch operand']
  #allocation3 [shape = 'f32[8,1]{1,0:T(8,128)}', space=vmem, size = 0x1000, scoped, tag = 'scratch operand']
  #allocation4 [shape = 'f32[8,1]{1,0:T(8,128)}', space=vmem, size = 0x1000, scoped, tag = 'scratch operand']
  %s0 = inlined_call_operand.vmem [shape: bf16[8,256], index: 0, kind: input, shape index: {}]
  %s1 = inlined_call_operand.hbm [shape: bf16[256,128], index: 1, kind: input, shape index: {}]
  %s2 = inlined_call_operand.vmem [shape: f32[1,128], index: 2, kind: input, shape index: {}]
  %s3 = inlined_call_operand.vmem [shape: s32[8,1], index: 3, kind: input, shape index: {}]
  %s4 = inlined_call_operand.hbm [shape: f32[8,128], index: 4, kind: output, shape index: {0}]
  %s5 = inlined_call_operand.vmem [shape: f32[8,1], index: 5, kind: output, shape index: {1}]
  %s6 = inlined_call_operand.vmem [shape: f32[8,1], index: 6, kind: output, shape index: {2}]
  %7 = xla_tuple %s4, %s5, %s6
  %s8 = sld [smem:[#allocation0]]
  $region54: #{tpu_custom_call.1} parent=0
    _
  %s10 = ssub.s32 1, %s8
  %s11 = scalar_select 0, %s10, %s8
  $region1: #{tpu_custom_call.1} parent=0
    #allocation5 [shape = 'u8[65536]{0}', space=vmem, size = 0x10000, scoped, tag = 'input window, operand 1, single buffered']
    #allocation6 [shape = 's32[1]{0}', space=sflag, size = 0x4, scoped, tag = 'scoped memory for tpu_custom_call.1']
    #allocation7 [shape = 's32[1]{0}', space=sflag, size = 0x4, scoped, tag = 'scoped memory for tpu_custom_call.1']
    #allocation8 [shape = 'u8[4096]{0}', space=vmem, size = 0x1000, scoped, tag = 'output window, operand 0, single buffered']
    %12 = vsyncpa [#allocation6], 0
    %13 = vsyncpa [#allocation7], 0
    // Predicated region
    $region2: #{tpu_custom_call.1} parent=1 // pred_check
      _
    $region3: #{tpu_custom_call.1} parent=1 // pred_check_branch
      %15 = sbr.rel (0) target = $region5
    $region4: #{tpu_custom_call.1} parent=1 // pred_region
      _
    $region5: #{tpu_custom_call.1} parent=1 // pred_fallthru
      _
    // Predicated region
    $region6: #{tpu_custom_call.1} parent=1 // pred_check
      _
    $region7: #{tpu_custom_call.1} parent=1 // pred_check_branch
      %17 = sbr.rel (0) target = $region9
    $region8: #{tpu_custom_call.1} parent=1 // pred_region
      %19 = vsyncadd [#allocation6], 0
      %s20 = sshll.u32 %s1, 4
      %s21 = int_to_ptr.hbm [resolvable:$true] %s20
      %s22 = sshll.u32 [#allocation5], 4
      %s23 = int_to_ptr.vmem [resolvable:$true] %s22
      %28 = dma.hbm_to_vmem [thread:$0]  %s21, 2048, %s23, [#allocation6], 64, 64, 4
    $region9: #{tpu_custom_call.1} parent=1 // pred_fallthru
      _
    // Predicated region
    $region10: #{tpu_custom_call.1} parent=1 // pred_check
      _
    $region11: #{tpu_custom_call.1} parent=1 // pred_check_branch
      %30 = sbr.rel (0) target = $region13
    $region12: #{tpu_custom_call.1} parent=1 // pred_region
      _
    $region13: #{tpu_custom_call.1} parent=1 // pred_fallthru
      _
    // Predicated region
    $region14: #{tpu_custom_call.1} parent=1 // pred_check
      _
    $region15: #{tpu_custom_call.1} parent=1 // pred_check_branch
      %32 = sbr.rel (0) target = $region17
    $region16: #{tpu_custom_call.1} parent=1 // pred_region
      _
    $region17: #{tpu_custom_call.1} parent=1 // pred_fallthru
      _
    // Predicated region
    $region18: #{tpu_custom_call.1} parent=1 // pred_check
      _
    $region19: #{tpu_custom_call.1} parent=1 // pred_check_branch
      %34 = sbr.rel (0) target = $region21
    $region20: #{tpu_custom_call.1} parent=1 // pred_region
      %36 = dma.done [#allocation6], 2048
    $region21: #{tpu_custom_call.1} parent=1 // pred_fallthru
      _
    %p37 = scmp.eq.s32.totalorder 0, 0
    // Predicated region
    $region22: #{tpu_custom_call.1} parent=1 // pred_check
      %p38 = pneg %p37
    $region23: #{tpu_custom_call.1} parent=1 // pred_check_branch
      %40 = sbr.rel (%p38) target = $region25
    $region24: #{tpu_custom_call.1} parent=1 // pred_region
      %vm41 = vcmask 7168
      %42 = vst.msk [vmem:[#allocation2] sm:$0xff] %vm41, -1e+30
      %43 = vst.msk [vmem:[#allocation3] sm:$0xff] %vm41, 0.0
      %44 = vst.msk [vmem:[#allocation4] sm:$0xff] %vm41, 0.0
    $region25: #{tpu_custom_call.1} parent=1 // pred_fallthru
      _
    %v45 = vld [vmem:[%s0] sm:$0xff]
    %v46 = vld [vmem:[#allocation5] sm:$0xf]
    %v47 = vld [vmem:[#allocation5 + $0x4] sm:$0xf]
    %v48 = vld [vmem:[#allocation5 + $0x8] sm:$0xf]
    %v49 = vld [vmem:[#allocation5 + $0xc] sm:$0xf]
    %v50 = vld [vmem:[#allocation5 + $0x10] sm:$0xf]
    %v51 = vld [vmem:[#allocation5 + $0x14] sm:$0xf]
    %v52 = vld [vmem:[#allocation5 + $0x18] sm:$0xf]
    %v53 = vld [vmem:[#allocation5 + $0x1c] sm:$0xf]
    %v54 = vld [vmem:[#allocation5 + $0x20] sm:$0xf]
    %v55 = vld [vmem:[#allocation5 + $0x24] sm:$0xf]
    %v56 = vld [vmem:[#allocation5 + $0x28] sm:$0xf]
    %v57 = vld [vmem:[#allocation5 + $0x2c] sm:$0xf]
    %v58 = vld [vmem:[#allocation5 + $0x30] sm:$0xf]
    %v59 = vld [vmem:[#allocation5 + $0x34] sm:$0xf]
    %v60 = vld [vmem:[#allocation5 + $0x38] sm:$0xf]
    %v61 = vld [vmem:[#allocation5 + $0x3c] sm:$0xf]
    %v62 = vld [vmem:[#allocation5 + $0x40] sm:$0xf]
    %v63 = vld [vmem:[#allocation5 + $0x44] sm:$0xf]
    %v64 = vld [vmem:[#allocation5 + $0x48] sm:$0xf]
    %v65 = vld [vmem:[#allocation5 + $0x4c] sm:$0xf]
    %v66 = vld [vmem:[#allocation5 + $0x50] sm:$0xf]
    %v67 = vld [vmem:[#allocation5 + $0x54] sm:$0xf]
    %v68 = vld [vmem:[#allocation5 + $0x58] sm:$0xf]
    %v69 = vld [vmem:[#allocation5 + $0x5c] sm:$0xf]
    %v70 = vld [vmem:[#allocation5 + $0x60] sm:$0xf]
    %v71 = vld [vmem:[#allocation5 + $0x64] sm:$0xf]
    %v72 = vld [vmem:[#allocation5 + $0x68] sm:$0xf]
    %v73 = vld [vmem:[#allocation5 + $0x6c] sm:$0xf]
    %v74 = vld [vmem:[#allocation5 + $0x70] sm:$0xf]
    %v75 = vld [vmem:[#allocation5 + $0x74] sm:$0xf]
    %v76 = vld [vmem:[#allocation5 + $0x78] sm:$0xf]
    %v77 = vld [vmem:[#allocation5 + $0x7c] sm:$0xf]
    %v79 = vunpack.c.l.b16 %v45
    %v80 = vunpack.c.h.b16 %v45
    %v81 = vpack.c.b16 %v79, %v79
    %v82 = vpack.c.b16 %v80, %v80
    %v117 = vunpack.c.l.b16 %v46
    %v118 = vunpack.c.l.b16 %v47
    %v119 = vunpack.c.l.b16 %v48
    %v120 = vunpack.c.l.b16 %v49
    %v121 = vunpack.c.l.b16 %v50
    %v122 = vunpack.c.l.b16 %v51
    %v123 = vunpack.c.l.b16 %v52
    %v124 = vunpack.c.l.b16 %v53
    %v125 = vunpack.c.l.b16 %v54
    %v126 = vunpack.c.l.b16 %v55
    %v127 = vunpack.c.l.b16 %v56
    %v128 = vunpack.c.l.b16 %v57
    %v129 = vunpack.c.l.b16 %v58
    %v130 = vunpack.c.l.b16 %v59
    %v131 = vunpack.c.l.b16 %v60
    %v132 = vunpack.c.l.b16 %v61
    %v133 = vunpack.c.l.b16 %v62
    %v134 = vunpack.c.l.b16 %v63
    %v135 = vunpack.c.l.b16 %v64
    %v136 = vunpack.c.l.b16 %v65
    %v137 = vunpack.c.l.b16 %v66
    %v138 = vunpack.c.l.b16 %v67
    %v139 = vunpack.c.l.b16 %v68
    %v140 = vunpack.c.l.b16 %v69
    %v141 = vunpack.c.l.b16 %v70
    %v142 = vunpack.c.l.b16 %v71
    %v143 = vunpack.c.l.b16 %v72
    %v144 = vunpack.c.l.b16 %v73
    %v145 = vunpack.c.l.b16 %v74
    %v146 = vunpack.c.l.b16 %v75
    %v147 = vunpack.c.l.b16 %v76
    %v148 = vunpack.c.l.b16 %v77
    %v149 = vpack.c.b16 %v118, %v117
    %v150 = vpack.c.b16 %v120, %v119
    %v151 = vpack.c.b16 %v122, %v121
    %v152 = vpack.c.b16 %v124, %v123
    %v153 = vpack.c.b16 %v126, %v125
    %v154 = vpack.c.b16 %v128, %v127
    %v155 = vpack.c.b16 %v130, %v129
    %v156 = vpack.c.b16 %v132, %v131
    %v157 = vpack.c.b16 %v134, %v133
    %v158 = vpack.c.b16 %v136, %v135
    %v159 = vpack.c.b16 %v138, %v137
    %v160 = vpack.c.b16 %v140, %v139
    %v161 = vpack.c.b16 %v142, %v141
    %v162 = vpack.c.b16 %v144, %v143
    %v163 = vpack.c.b16 %v146, %v145
    %v164 = vpack.c.b16 %v148, %v147
    %181 = vmatpush.bf16.msra.mxu0 %v156
    %182 = vmatpush.bf16.msra.mxu0 %v155
    %183 = vmatpush.bf16.msra.mxu0 %v154
    %184 = vmatpush.bf16.msra.mxu0 %v153
    %185 = vmatpush.bf16.msra.mxu0 %v152
    %186 = vmatpush.bf16.msra.mxu0 %v151
    %187 = vmatpush.bf16.msra.mxu0 %v150
    %188 = vmatpush.bf16.msra.mxu0 %v149
    %189 = vmatmul.bf16.gmra.mxu0 %v81
    %v190 = vpop.f32.mrf.mxu0
    %v191 = vadd.f32 0.0, %v190
    %v192 = vpop.f32.mrf.mxu0
    %193 = vdwg.mxu0
    %194 = vmatpush.bf16.msra.mxu0 %v164
    %195 = vmatpush.bf16.msra.mxu0 %v163
    %196 = vmatpush.bf16.msra.mxu0 %v162
    %197 = vmatpush.bf16.msra.mxu0 %v161
    %198 = vmatpush.bf16.msra.mxu0 %v160
    %199 = vmatpush.bf16.msra.mxu0 %v159
    %200 = vmatpush.bf16.msra.mxu0 %v158
    %201 = vmatpush.bf16.msra.mxu0 %v157
    %202 = vmatmul.bf16.gmra.mxu0 %v82
    %v203 = vpop.f32.mrf.mxu0
    %v204 = vadd.f32 %v191, %v203
    %v205 = vpop.f32.mrf.mxu0
    %206 = vdwg.mxu0
    %v207 = vmax.f32 %v204, -1.0
    %v208 = vmin.f32 %v207, 1.0
    %209 = vst [vmem:[#allocation8] sm:$0xff] %v208
    %v210 = vlaneseq
    %v211 = vand.u32 %v210, 127
    %v212 = vld [vmem:[%s3] sm:$0xff]
    %s213 = smul.u32 0, 128
    %v214 = vstv %s213
    %v215 = vsub.s32 %v212, %v214
    %216 = vset.pattern.permute.xlu0 0
    %217 = vperm.xlu0 %216, %v215
    %v218 = vpop.permute.xlu0 %217
    %vm219 = vcmp.eq.s32.totalorder %v211, %v218
    %v220 = vsel %vm219, %v208, 0.0
    %221 = vadd.xlane.f32.xlu0 %v220
    %v222 = vpop.xlane.xlu0 %221
    %v223 = vld [vmem:[#allocation4] sm:$0xff]
    %v224 = vadd.f32 %v223, %v222
    %vm225 = vcmask 7168
    %226 = vst.msk [vmem:[#allocation4] sm:$0xff] %vm225, %v224
    %v227 = vadd.f32 %v208, 0.35
    %v228 = vmax.f32 %v227, 0.0
    %v229 = vmul.f32 %v228, 30.0
    %v230 = vsub.f32 %v208, 0.35
    %v231 = vmul.f32 %v229, %v230
    %v232 = vsub.f32 1.35, %v222
    %v233 = vmax.f32 %v232, 0.0
    %v234 = vmul.f32 %v233, 30.0
    %v235 = vsub.f32 %v222, 0.65
    %v236 = vmul.f32 %v234, %v235
    %v237 = vsel %vm219, %v236, %v231
    %v238 = vld [vmem:[%s2] sm:$0x1]
    %v240 = vperm.slane %v238, 0
    %v242 = vadd.f32 %v237, %v240
    %v243 = vld [vmem:[#allocation2] sm:$0xff]
    %244 = vmax.xlane.f32.xlu0 %v242
    %v245 = vpop.xlane.xlu0 %244
    %v246 = vmax.f32 %v243, %v245
    %v247 = vld [vmem:[#allocation3] sm:$0xff]
    %v248 = vsub.f32 %v243, %v246
    %v249 = vmul.f32 %v248, 1.442695
    %v250 = vpow.pop %v249
    %v251 = vmul.f32 %v247, %v250
    %253 = vset.pattern.permute.xlu0 0
    %254 = vperm.xlu0 %253, %v246
    %v255 = vpop.permute.xlu0 %254
    %v257 = vsub.f32 %v242, %v255
    %v258 = vmul.f32 %v257, 1.442695
    %v259 = vpow.pop %v258
    %260 = vadd.xlane.f32.xlu0 %v259
    %v261 = vpop.xlane.xlu0 %260
    %v262 = vadd.f32 %v251, %v261
    %263 = vst.msk [vmem:[#allocation3] sm:$0xff] %vm225, %v262
    %264 = vst.msk [vmem:[#allocation2] sm:$0xff] %vm225, %v246
    // Predicated region
    $region26: #{tpu_custom_call.1} parent=1 // pred_check
      %p265 = pneg %p37
    $region27: #{tpu_custom_call.1} parent=1 // pred_check_branch
      %267 = sbr.rel (%p265) target = $region29
    $region28: #{tpu_custom_call.1} parent=1 // pred_region
      %v268 = vld [vmem:[#allocation4] sm:$0xff]
      %v269 = vsub.f32 1.35, %v268
      %v270 = vmax.f32 %v269, 0.0
      %v271 = vmul.f32 %v270, 30.0
      %v272 = vsub.f32 %v268, 0.65
      %v273 = vmul.f32 %v271, %v272
      %v274 = vld [vmem:[#allocation2] sm:$0xff]
      %v275 = vld [vmem:[#allocation3] sm:$0xff]
      %v276 = vlog2.pop %v275
      %v277 = vmul.f32 %v276, 0.6931472
      %v278 = vadd.f32 %v274, %v277
      %v279 = vsub.f32 %v278, %v273
      %280 = vst.msk [vmem:[%s5] sm:$0xff] %vm225, %v279
      %281 = vst.msk [vmem:[%s6] sm:$0xff] %vm225, %v268
    $region29: #{tpu_custom_call.1} parent=1 // pred_fallthru
      _
    // Predicated region
    $region30: #{tpu_custom_call.1} parent=1 // pred_check
      _
    $region31: #{tpu_custom_call.1} parent=1 // pred_check_branch
      %283 = sbr.rel (0) target = $region33
    $region32: #{tpu_custom_call.1} parent=1 // pred_region
      %285 = vsyncadd [#allocation7], 0
      %s287 = sshll.u32 [#allocation8], 4
      %s288 = int_to_ptr.vmem [resolvable:$true] %s287
      %s289 = sshll.u32 %s4, 4
      %s290 = int_to_ptr.hbm [resolvable:$true] %s289
      %292 = dma.vmem_to_hbm [thread:$0]  %s288, 128, %s290, [#allocation7]
    $region33: #{tpu_custom_call.1} parent=1 // pred_fallthru
      _
    // Predicated region
    $region34: #{tpu_custom_call.1} parent=1 // pred_check
      _
    $region35: #{tpu_custom_call.1} parent=1 // pred_check_branch
      %294 = sbr.rel (0) target = $region37
    $region36: #{tpu_custom_call.1} parent=1 // pred_region
      _
    $region37: #{tpu_custom_call.1} parent=1 // pred_fallthru
      _
    // Predicated region
    $region38: #{tpu_custom_call.1} parent=1 // pred_check
      _
    $region39: #{tpu_custom_call.1} parent=1 // pred_check_branch
      %296 = sbr.rel (0) target = $region41
    $region40: #{tpu_custom_call.1} parent=1 // pred_region
      _
    $region41: #{tpu_custom_call.1} parent=1 // pred_fallthru
      _
    // Predicated region
    $region42: #{tpu_custom_call.1} parent=1 // pred_check
      _
    $region43: #{tpu_custom_call.1} parent=1 // pred_check_branch
      %298 = sbr.rel (0) target = $region45
    $region44: #{tpu_custom_call.1} parent=1 // pred_region
      %300 = dma.done [#allocation7], 128
    $region45: #{tpu_custom_call.1} parent=1 // pred_fallthru
      _
    // Predicated region
    $region46: #{tpu_custom_call.1} parent=1 // pred_check
      _
    $region47: #{tpu_custom_call.1} parent=1 // pred_check_branch
      %302 = sbr.rel (0) target = $region49
    $region48: #{tpu_custom_call.1} parent=1 // pred_region
      _
    $region49: #{tpu_custom_call.1} parent=1 // pred_fallthru
      _
    // Predicated region
    $region50: #{tpu_custom_call.1} parent=1 // pred_check
      _
    $region51: #{tpu_custom_call.1} parent=1 // pred_check_branch
      %304 = sbr.rel (0) target = $region53
    $region52: #{tpu_custom_call.1} parent=1 // pred_region
      _
    $region53: #{tpu_custom_call.1} parent=1 // pred_fallthru
      _
    %305 = vsyncpa [#allocation6], 1
    %306 = vsyncpa [#allocation7], 1

// kernel: tpu_custom_call.1
$region0: #{tpu_custom_call.1}
  #allocation0 [shape = 'u32[]', space=smem, size = 0x4, offset = 0x4, fixed_abs, tag = 'smem constant byte address 0x4 - core index']
  #allocation1 [shape = 'u32[72,128]{1,0:T(1,128)}', space=vmem, size = 0x9000, scoped, tag = 'internal scratch']
  #allocation2 [shape = 'f32[8,1]{1,0:T(8,128)}', space=vmem, size = 0x1000, scoped, tag = 'scratch operand']
  #allocation3 [shape = 'f32[8,1]{1,0:T(8,128)}', space=vmem, size = 0x1000, scoped, tag = 'scratch operand']
  #allocation4 [shape = 'f32[8,1]{1,0:T(8,128)}', space=vmem, size = 0x1000, scoped, tag = 'scratch operand']
  %s0 = inlined_call_operand.vmem [shape: bf16[8,256], index: 0, kind: input, shape index: {}]
  %s1 = inlined_call_operand.hbm [shape: bf16[256,128], index: 1, kind: input, shape index: {}]
  %s2 = inlined_call_operand.vmem [shape: f32[1,128], index: 2, kind: input, shape index: {}]
  %s3 = inlined_call_operand.vmem [shape: s32[8,1], index: 3, kind: input, shape index: {}]
  %s4 = inlined_call_operand.hbm [shape: f32[8,128], index: 4, kind: output, shape index: {0}]
  %s5 = inlined_call_operand.vmem [shape: f32[8,1], index: 5, kind: output, shape index: {1}]
  %s6 = inlined_call_operand.vmem [shape: f32[8,1], index: 6, kind: output, shape index: {2}]
  %7 = xla_tuple %s4, %s5, %s6
  %s8 = sld [smem:[#allocation0]]
  $region54: #{tpu_custom_call.1} parent=0
    _
  %s10 = ssub.s32 1, %s8
  %s11 = scalar_select 0, %s10, %s8
  $region1: #{tpu_custom_call.1} parent=0
    #allocation5 [shape = 'u8[65536]{0}', space=vmem, size = 0x10000, scoped, tag = 'input window, operand 1, single buffered']
    #allocation6 [shape = 's32[1]{0}', space=sflag, size = 0x4, scoped, tag = 'scoped memory for tpu_custom_call.1']
    #allocation7 [shape = 's32[1]{0}', space=sflag, size = 0x4, scoped, tag = 'scoped memory for tpu_custom_call.1']
    #allocation8 [shape = 'u8[4096]{0}', space=vmem, size = 0x1000, scoped, tag = 'output window, operand 0, single buffered']
    %12 = vsyncpa [#allocation6], 0
    %13 = vsyncpa [#allocation7], 0
    // Predicated region
    $region2: #{tpu_custom_call.1} parent=1 // pred_check
      _
    $region3: #{tpu_custom_call.1} parent=1 // pred_check_branch
      %15 = sbr.rel (0) target = $region5
    $region4: #{tpu_custom_call.1} parent=1 // pred_region
      _
    $region5: #{tpu_custom_call.1} parent=1 // pred_fallthru
      _
    // Predicated region
    $region6: #{tpu_custom_call.1} parent=1 // pred_check
      _
    $region7: #{tpu_custom_call.1} parent=1 // pred_check_branch
      %17 = sbr.rel (0) target = $region9
    $region8: #{tpu_custom_call.1} parent=1 // pred_region
      %19 = vsyncadd [#allocation6], 0
      %s20 = sshll.u32 %s1, 4
      %s21 = int_to_ptr.hbm [resolvable:$true] %s20
      %s22 = sshll.u32 [#allocation5], 4
      %s23 = int_to_ptr.vmem [resolvable:$true] %s22
      %28 = dma.hbm_to_vmem [thread:$0]  %s21, 2048, %s23, [#allocation6], 64, 64, 4
    $region9: #{tpu_custom_call.1} parent=1 // pred_fallthru
      _
    // Predicated region
    $region10: #{tpu_custom_call.1} parent=1 // pred_check
      _
    $region11: #{tpu_custom_call.1} parent=1 // pred_check_branch
      %30 = sbr.rel (0) target = $region13
    $region12: #{tpu_custom_call.1} parent=1 // pred_region
      _
    $region13: #{tpu_custom_call.1} parent=1 // pred_fallthru
      _
    // Predicated region
    $region14: #{tpu_custom_call.1} parent=1 // pred_check
      _
    $region15: #{tpu_custom_call.1} parent=1 // pred_check_branch
      %32 = sbr.rel (0) target = $region17
    $region16: #{tpu_custom_call.1} parent=1 // pred_region
      _
    $region17: #{tpu_custom_call.1} parent=1 // pred_fallthru
      _
    // Predicated region
    $region18: #{tpu_custom_call.1} parent=1 // pred_check
      _
    $region19: #{tpu_custom_call.1} parent=1 // pred_check_branch
      %34 = sbr.rel (0) target = $region21
    $region20: #{tpu_custom_call.1} parent=1 // pred_region
      %36 = dma.done [#allocation6], 2048
    $region21: #{tpu_custom_call.1} parent=1 // pred_fallthru
      _
    %p37 = scmp.eq.s32.totalorder 0, 0
    // Predicated region
    $region22: #{tpu_custom_call.1} parent=1 // pred_check
      %p38 = pneg %p37
    $region23: #{tpu_custom_call.1} parent=1 // pred_check_branch
      %40 = sbr.rel (%p38) target = $region25
    $region24: #{tpu_custom_call.1} parent=1 // pred_region
      %vm41 = vcmask 7168
      %42 = vst.msk [vmem:[#allocation2] sm:$0xff] %vm41, -1e+30
      %43 = vst.msk [vmem:[#allocation3] sm:$0xff] %vm41, 0.0
      %44 = vst.msk [vmem:[#allocation4] sm:$0xff] %vm41, 0.0
    $region25: #{tpu_custom_call.1} parent=1 // pred_fallthru
      _
    %v45 = vld [vmem:[%s0] sm:$0xff]
    %v46 = vld [vmem:[#allocation5] sm:$0xf]
    %v47 = vld [vmem:[#allocation5 + $0x4] sm:$0xf]
    %v48 = vld [vmem:[#allocation5 + $0x8] sm:$0xf]
    %v49 = vld [vmem:[#allocation5 + $0xc] sm:$0xf]
    %v50 = vld [vmem:[#allocation5 + $0x10] sm:$0xf]
    %v51 = vld [vmem:[#allocation5 + $0x14] sm:$0xf]
    %v52 = vld [vmem:[#allocation5 + $0x18] sm:$0xf]
    %v53 = vld [vmem:[#allocation5 + $0x1c] sm:$0xf]
    %v54 = vld [vmem:[#allocation5 + $0x20] sm:$0xf]
    %v55 = vld [vmem:[#allocation5 + $0x24] sm:$0xf]
    %v56 = vld [vmem:[#allocation5 + $0x28] sm:$0xf]
    %v57 = vld [vmem:[#allocation5 + $0x2c] sm:$0xf]
    %v58 = vld [vmem:[#allocation5 + $0x30] sm:$0xf]
    %v59 = vld [vmem:[#allocation5 + $0x34] sm:$0xf]
    %v60 = vld [vmem:[#allocation5 + $0x38] sm:$0xf]
    %v61 = vld [vmem:[#allocation5 + $0x3c] sm:$0xf]
    %v62 = vld [vmem:[#allocation5 + $0x40] sm:$0xf]
    %v63 = vld [vmem:[#allocation5 + $0x44] sm:$0xf]
    %v64 = vld [vmem:[#allocation5 + $0x48] sm:$0xf]
    %v65 = vld [vmem:[#allocation5 + $0x4c] sm:$0xf]
    %v66 = vld [vmem:[#allocation5 + $0x50] sm:$0xf]
    %v67 = vld [vmem:[#allocation5 + $0x54] sm:$0xf]
    %v68 = vld [vmem:[#allocation5 + $0x58] sm:$0xf]
    %v69 = vld [vmem:[#allocation5 + $0x5c] sm:$0xf]
    %v70 = vld [vmem:[#allocation5 + $0x60] sm:$0xf]
    %v71 = vld [vmem:[#allocation5 + $0x64] sm:$0xf]
    %v72 = vld [vmem:[#allocation5 + $0x68] sm:$0xf]
    %v73 = vld [vmem:[#allocation5 + $0x6c] sm:$0xf]
    %v74 = vld [vmem:[#allocation5 + $0x70] sm:$0xf]
    %v75 = vld [vmem:[#allocation5 + $0x74] sm:$0xf]
    %v76 = vld [vmem:[#allocation5 + $0x78] sm:$0xf]
    %v77 = vld [vmem:[#allocation5 + $0x7c] sm:$0xf]
    %v79 = vunpack.c.l.b16 %v45
    %v80 = vunpack.c.h.b16 %v45
    %v81 = vpack.c.b16 %v79, %v79
    %v82 = vpack.c.b16 %v80, %v80
    %v117 = vunpack.c.l.b16 %v46
    %v118 = vunpack.c.l.b16 %v47
    %v119 = vunpack.c.l.b16 %v48
    %v120 = vunpack.c.l.b16 %v49
    %v121 = vunpack.c.l.b16 %v50
    %v122 = vunpack.c.l.b16 %v51
    %v123 = vunpack.c.l.b16 %v52
    %v124 = vunpack.c.l.b16 %v53
    %v125 = vunpack.c.l.b16 %v54
    %v126 = vunpack.c.l.b16 %v55
    %v127 = vunpack.c.l.b16 %v56
    %v128 = vunpack.c.l.b16 %v57
    %v129 = vunpack.c.l.b16 %v58
    %v130 = vunpack.c.l.b16 %v59
    %v131 = vunpack.c.l.b16 %v60
    %v132 = vunpack.c.l.b16 %v61
    %v133 = vunpack.c.l.b16 %v62
    %v134 = vunpack.c.l.b16 %v63
    %v135 = vunpack.c.l.b16 %v64
    %v136 = vunpack.c.l.b16 %v65
    %v137 = vunpack.c.l.b16 %v66
    %v138 = vunpack.c.l.b16 %v67
    %v139 = vunpack.c.l.b16 %v68
    %v140 = vunpack.c.l.b16 %v69
    %v141 = vunpack.c.l.b16 %v70
    %v142 = vunpack.c.l.b16 %v71
    %v143 = vunpack.c.l.b16 %v72
    %v144 = vunpack.c.l.b16 %v73
    %v145 = vunpack.c.l.b16 %v74
    %v146 = vunpack.c.l.b16 %v75
    %v147 = vunpack.c.l.b16 %v76
    %v148 = vunpack.c.l.b16 %v77
    %v149 = vpack.c.b16 %v118, %v117
    %v150 = vpack.c.b16 %v120, %v119
    %v151 = vpack.c.b16 %v122, %v121
    %v152 = vpack.c.b16 %v124, %v123
    %v153 = vpack.c.b16 %v126, %v125
    %v154 = vpack.c.b16 %v128, %v127
    %v155 = vpack.c.b16 %v130, %v129
    %v156 = vpack.c.b16 %v132, %v131
    %v157 = vpack.c.b16 %v134, %v133
    %v158 = vpack.c.b16 %v136, %v135
    %v159 = vpack.c.b16 %v138, %v137
    %v160 = vpack.c.b16 %v140, %v139
    %v161 = vpack.c.b16 %v142, %v141
    %v162 = vpack.c.b16 %v144, %v143
    %v163 = vpack.c.b16 %v146, %v145
    %v164 = vpack.c.b16 %v148, %v147
    %181 = vmatpush.bf16.msra.mxu0 %v156
    %182 = vmatpush.bf16.msra.mxu0 %v155
    %183 = vmatpush.bf16.msra.mxu0 %v154
    %184 = vmatpush.bf16.msra.mxu0 %v153
    %185 = vmatpush.bf16.msra.mxu0 %v152
    %186 = vmatpush.bf16.msra.mxu0 %v151
    %187 = vmatpush.bf16.msra.mxu0 %v150
    %188 = vmatpush.bf16.msra.mxu0 %v149
    %189 = vmatmul.bf16.gmra.mxu0 %v81
    %v190 = vpop.f32.mrf.mxu0
    %v191 = vadd.f32 0.0, %v190
    %v192 = vpop.f32.mrf.mxu0
    %193 = vdwg.mxu0
    %194 = vmatpush.bf16.msra.mxu0 %v164
    %195 = vmatpush.bf16.msra.mxu0 %v163
    %196 = vmatpush.bf16.msra.mxu0 %v162
    %197 = vmatpush.bf16.msra.mxu0 %v161
    %198 = vmatpush.bf16.msra.mxu0 %v160
    %199 = vmatpush.bf16.msra.mxu0 %v159
    %200 = vmatpush.bf16.msra.mxu0 %v158
    %201 = vmatpush.bf16.msra.mxu0 %v157
    %202 = vmatmul.bf16.gmra.mxu0 %v82
    %v203 = vpop.f32.mrf.mxu0
    %v204 = vadd.f32 %v191, %v203
    %v205 = vpop.f32.mrf.mxu0
    %206 = vdwg.mxu0
    %v207 = vmax.f32 %v204, -1.0
    %v208 = vmin.f32 %v207, 1.0
    %209 = vst [vmem:[#allocation8] sm:$0xff] %v208
    %v210 = vlaneseq
    %v211 = vand.u32 %v210, 127
    %v212 = vld [vmem:[%s3] sm:$0xff]
    %s213 = smul.u32 0, 128
    %v214 = vstv %s213
    %v215 = vsub.s32 %v212, %v214
    %216 = vset.pattern.permute.xlu0 0
    %217 = vperm.xlu0 %216, %v215
    %v218 = vpop.permute.xlu0 %217
    %vm219 = vcmp.eq.s32.totalorder %v211, %v218
    %v220 = vsel %vm219, %v208, 0.0
    %221 = vadd.xlane.f32.xlu0 %v220
    %v222 = vpop.xlane.xlu0 %221
    %v223 = vld [vmem:[#allocation4] sm:$0xff]
    %v224 = vadd.f32 %v223, %v222
    %vm225 = vcmask 7168
    %226 = vst.msk [vmem:[#allocation4] sm:$0xff] %vm225, %v224
    %v227 = vadd.f32 %v208, 0.35
    %v228 = vmax.f32 %v227, 0.0
    %v229 = vmul.f32 %v228, 30.0
    %v230 = vsub.f32 %v208, 0.35
    %v231 = vmul.f32 %v229, %v230
    %v232 = vsub.f32 1.35, %v222
    %v233 = vmax.f32 %v232, 0.0
    %v234 = vmul.f32 %v233, 30.0
    %v235 = vsub.f32 %v222, 0.65
    %v236 = vmul.f32 %v234, %v235
    %v237 = vsel %vm219, %v236, %v231
    %v238 = vld [vmem:[%s2] sm:$0x1]
    %v240 = vperm.slane %v238, 0
    %v242 = vadd.f32 %v237, %v240
    %v243 = vld [vmem:[#allocation2] sm:$0xff]
    %244 = vmax.xlane.f32.xlu0 %v242
    %v245 = vpop.xlane.xlu0 %244
    %v246 = vmax.f32 %v243, %v245
    %v247 = vld [vmem:[#allocation3] sm:$0xff]
    %v248 = vsub.f32 %v243, %v246
    %v249 = vmul.f32 %v248, 1.442695
    %v250 = vpow.pop %v249
    %v251 = vmul.f32 %v247, %v250
    %253 = vset.pattern.permute.xlu0 0
    %254 = vperm.xlu0 %253, %v246
    %v255 = vpop.permute.xlu0 %254
    %v257 = vsub.f32 %v242, %v255
    %v258 = vmul.f32 %v257, 1.442695
    %v259 = vpow.pop %v258
    %260 = vadd.xlane.f32.xlu0 %v259
    %v261 = vpop.xlane.xlu0 %260
    %v262 = vadd.f32 %v251, %v261
    %263 = vst.msk [vmem:[#allocation3] sm:$0xff] %vm225, %v262
    %264 = vst.msk [vmem:[#allocation2] sm:$0xff] %vm225, %v246
    // Predicated region
    $region26: #{tpu_custom_call.1} parent=1 // pred_check
      %p265 = pneg %p37
    $region27: #{tpu_custom_call.1} parent=1 // pred_check_branch
      %267 = sbr.rel (%p265) target = $region29
    $region28: #{tpu_custom_call.1} parent=1 // pred_region
      %v268 = vld [vmem:[#allocation4] sm:$0xff]
      %v269 = vsub.f32 1.35, %v268
      %v270 = vmax.f32 %v269, 0.0
      %v271 = vmul.f32 %v270, 30.0
      %v272 = vsub.f32 %v268, 0.65
      %v273 = vmul.f32 %v271, %v272
      %v274 = vld [vmem:[#allocation2] sm:$0xff]
      %v275 = vld [vmem:[#allocation3] sm:$0xff]
      %v276 = vlog2.pop %v275
      %v277 = vmul.f32 %v276, 0.6931472
      %v278 = vadd.f32 %v274, %v277
      %v279 = vsub.f32 %v278, %v273
      %280 = vst.msk [vmem:[%s5] sm:$0xff] %vm225, %v279
      %281 = vst.msk [vmem:[%s6] sm:$0xff] %vm225, %v268
    $region29: #{tpu_custom_call.1} parent=1 // pred_fallthru
      _
    // Predicated region
    $region30: #{tpu_custom_call.1} parent=1 // pred_check
      _
    $region31: #{tpu_custom_call.1} parent=1 // pred_check_branch
      %283 = sbr.rel (0) target = $region33
    $region32: #{tpu_custom_call.1} parent=1 // pred_region
      %285 = vsyncadd [#allocation7], 0
      %s287 = sshll.u32 [#allocation8], 4
      %s288 = int_to_ptr.vmem [resolvable:$true] %s287
      %s289 = sshll.u32 %s4, 4
      %s290 = int_to_ptr.hbm [resolvable:$true] %s289
      %292 = dma.vmem_to_hbm [thread:$0]  %s288, 128, %s290, [#allocation7]
    $region33: #{tpu_custom_call.1} parent=1 // pred_fallthru
      _
    // Predicated region
    $region34: #{tpu_custom_call.1} parent=1 // pred_check
      _
    $region35: #{tpu_custom_call.1} parent=1 // pred_check_branch
      %294 = sbr.rel (0) target = $region37
    $region36: #{tpu_custom_call.1} parent=1 // pred_region
      _
    $region37: #{tpu_custom_call.1} parent=1 // pred_fallthru
      _
    // Predicated region
    $region38: #{tpu_custom_call.1} parent=1 // pred_check
      _
    $region39: #{tpu_custom_call.1} parent=1 // pred_check_branch
      %296 = sbr.rel (0) target = $region41
    $region40: #{tpu_custom_call.1} parent=1 // pred_region
      _
    $region41: #{tpu_custom_call.1} parent=1 // pred_fallthru
      _
    // Predicated region
    $region42: #{tpu_custom_call.1} parent=1 // pred_check
      _
    $region43: #{tpu_custom_call.1} parent=1 // pred_check_branch
      %298 = sbr.rel (0) target = $region45
    $region44: #{tpu_custom_call.1} parent=1 // pred_region
      %300 = dma.done [#allocation7], 128
    $region45: #{tpu_custom_call.1} parent=1 // pred_fallthru
      _
    // Predicated region
    $region46: #{tpu_custom_call.1} parent=1 // pred_check
      _
    $region47: #{tpu_custom_call.1} parent=1 // pred_check_branch
      %302 = sbr.rel (0) target = $region49
    $region48: #{tpu_custom_call.1} parent=1 // pred_region
      _
    $region49: #{tpu_custom_call.1} parent=1 // pred_fallthru
      _
    // Predicated region
    $region50: #{tpu_custom_call.1} parent=1 // pred_check
      _
    $region51: #{tpu_custom_call.1} parent=1 // pred_check_branch
      %304 = sbr.rel (0) target = $region53
    $region52: #{tpu_custom_call.1} parent=1 // pred_region
      _
    $region53: #{tpu_custom_call.1} parent=1 // pred_fallthru
      _
    %305 = vsyncpa [#allocation6], 1
    %306 = vsyncpa [#allocation7], 1

</llo_original>
